<compile_context>
chip_gen: v7x
topology: tpu7x:2x2x1
jax: 0.10.0
libtpu: 0.0.40
codegen_flags: <defaults>
</compile_context>

<pallas_src>
import functools

import jax
import jax.numpy as jnp
from jax.experimental import pallas as pl
from jax.experimental.pallas import tpu as pltpu


def _round_up(x, m):
    return (x + m - 1) // m * m


def _vmem_budget():
    """(vmem_limit_bytes, per-tile byte cap) derived from this chip's VMEM."""
    cap = 64 * 1024 * 1024  # conservative default (v7x-sized VMEM)
    try:
        cap = int(getattr(pltpu.get_tpu_info(), "vmem_capacity_bytes", cap)) or cap
    except Exception:
        pass
    limit = min((cap * 3) // 4, 96 * 1024 * 1024)  # 96 MiB on v5e/v6e, 48 MiB on v7x
    tile_cap = cap // 4                            # 2x double-buffered tile << limit
    return limit, tile_cap


def _choose_hw_tile(C, HW, itemsize, tile_cap_bytes):
    """Spatial tile (lanes) and number of reduction steps.

    Prefers the full flattened row (one contiguous DMA per image, n_k = 1);
    otherwise a lane-dense (multiple of 128) tile sized for the VMEM budget.
    """
    hw_pad = _round_up(HW, 128)
    if C * hw_pad * itemsize <= tile_cap_bytes:
        return HW, 1
    lanes = max(128, (tile_cap_bytes // (C * itemsize)) // 128 * 128)
    return lanes, pl.cdiv(HW, lanes)


def _channel_sum_kernel(x_ref, o_ref, acc_ref, *, hw, hw_tile, n_k):
    """Grid = (B, n_k); n_k is the "arbitrary" spatial-reduction axis.

    x_ref  : (1, C, hw_tile) tile of the flattened input (any float dtype)
    o_ref  : (1, 1, C) f32 raw channel sums for this batch row
    acc_ref: (1, C, 128) f32 VMEM accumulator of lane-group partial sums
    """
    k = pl.program_id(1)
    C = x_ref.shape[1]

    @pl.when(k == 0)
    def _():
        acc_ref[...] = jnp.zeros_like(acc_ref)

    n128 = hw_tile // 128
    ragged = hw_tile - n128 * 128            # < 128; nonzero only on full-row tiles
    last_valid = hw - (n_k - 1) * hw_tile    # valid lanes in the final spatial tile
    needs_mask = last_valid < hw_tile        # static: tail block holds garbage lanes

    def load_slice(off):
        off = pl.multiple_of(off, 128)
        slab = x_ref[:, :, pl.ds(off, 128)].astype(jnp.float32)
        if needs_mask:
            # Pallas does no OOB check on the last block: zero garbage lanes.
            lane = jax.lax.broadcasted_iota(jnp.int32, slab.shape, 2) + off
            keep = jnp.logical_or(k < n_k - 1, lane < last_valid)
            slab = jnp.where(keep, slab, 0.0)
        return slab

    if n128 > 0:
        if C <= 256:
            # Register-resident partials (<= 32 vregs live); two independent
            # chains for small C break the serial VPU dependency.
            n_car = 2 if (C <= 128 and n128 >= 2) else 1
            n_grp, rem = divmod(n128, n_car)
            carries = [jnp.zeros((1, C, 128), jnp.float32) for _ in range(n_car)]
            if n_grp > 0:
                if n_grp <= 16:
                    # Small trip count: full Python unroll, static offsets.
                    for g in range(n_grp):
                        for i in range(n_car):
                            carries[i] = carries[i] + load_slice((g * n_car + i) * 128)
                else:
                    def body(g, cs):
                        base = g * (n_car * 128)
                        return tuple(cs[i] + load_slice(base + i * 128)
                                     for i in range(n_car))
                    carries = list(jax.lax.fori_loop(0, n_grp, body, tuple(carries),
                                                     unroll=8))
            for i in range(rem):
                carries[0] = carries[0] + load_slice((n_grp * n_car + i) * 128)
            total = carries[0]
            for c in carries[1:]:
                total = total + c
            acc_ref[...] += total
        else:
            # Large C: one (1, C, 128) f32 partial alone would blow the vreg
            # file, so stream each slice straight into the VMEM accumulator
            # (hidden under the much slower HBM DMA).
            if n128 <= 16:
                for j in range(n128):
                    acc_ref[...] += load_slice(j * 128)
            else:
                @pl.loop(0, n128)
                def _(j):
                    acc_ref[...] += load_slice(j * 128)

    @pl.when(k == n_k - 1)
    def _():
        # One cross-lane (XLU) reduce per batch row, epilogue only.
        pooled = jnp.sum(acc_ref[...], axis=-1)                      # (1, C)
        if ragged > 0:  # sub-128-lane tail of a full-row tile (exact, no garbage)
            pooled = pooled + jnp.sum(
                x_ref[:, :, n128 * 128:hw_tile].astype(jnp.float32), axis=-1)
        o_ref[...] = pooled.reshape(o_ref.shape)


def _pooled_channel_sums(x_flat):
    """x_flat: (B, C, HW) any float dtype -> (B, C) f32 raw channel sums."""
    B, C, HW = x_flat.shape
    itemsize = jnp.dtype(x_flat.dtype).itemsize
    vmem_limit, tile_cap = _vmem_budget()
    hw_tile, n_k = _choose_hw_tile(C, HW, itemsize, tile_cap)

    kernel = functools.partial(_channel_sum_kernel, hw=HW, hw_tile=hw_tile, n_k=n_k)
    cost = pl.CostEstimate(
        flops=B * C * HW,
        transcendentals=0,
        bytes_accessed=B * C * HW * itemsize + B * C * 4,
    )

    out = pl.pallas_call(
        kernel,
        out_shape=jax.ShapeDtypeStruct((B, 1, C), jnp.float32),
        grid_spec=pltpu.PrefetchScalarGridSpec(
            num_scalar_prefetch=0,
            grid=(B, n_k),
            in_specs=[pl.BlockSpec((1, C, hw_tile), lambda b, k: (b, 0, k))],
            out_specs=pl.BlockSpec((1, 1, C), lambda b, k: (b, 0, 0)),
            scratch_shapes=[pltpu.VMEM((1, C, 128), jnp.float32)],
        ),
        compiler_params=pltpu.CompilerParams(
            dimension_semantics=("parallel", "arbitrary"),
            vmem_limit_bytes=vmem_limit,
        ),
        cost_estimate=cost,
    )(x_flat)
    return out[:, 0, :]


@functools.partial(jax.jit, static_argnames=("is_softmax",))
def channel_attn(x_nchw, w1_t, b1, w2_t, b2, *, is_softmax=False):
    """x_nchw: (B, C, H, W).  Returns attention map (B, C, 1, 1)."""
    B, C, H, W = x_nchw.shape
    HW = H * W

    # Pallas kernel: HBM-bound streaming reduction -> raw channel sums (B, C).
    sums = _pooled_channel_sums(x_nchw.reshape(B, C, HW))
    pooled = sums * (1.0 / float(HW))                    # global average pool

    # Tiny MLP head as one batched GEMM over B (BN folded, eval mode).
    h = jnp.maximum(pooled @ w1_t + b1, 0.0)             # (B, Cmid)
    y = h @ w2_t + b2                                    # (B, C)
    att = jax.nn.softmax(y, axis=1) if is_softmax else jax.nn.sigmoid(y)
    return att.reshape(B, C, 1, 1).astype(x_nchw.dtype)


def _fold_bn(w, b, gamma, beta, mean, var, eps=1e-5):
    """Fold BatchNorm2d (eval) into a 1x1 conv.  w: (out_c, in_c), b: (out_c,)."""
    scale = gamma / jnp.sqrt(var + eps)
    w_eff = w * scale[:, None]
    b_eff = (b - mean) * scale + beta
    return w_eff, b_eff


def init_params(key, in_channels, reduction_rate=16):
    assert in_channels % reduction_rate == 0
    mid = in_channels // reduction_rate
    k1, k2, k3, k4 = jax.random.split(key, 4)

    # conv1: Conv2d(C, mid, 1) -> weight (mid, C), bias (mid,)
    bound1 = 1.0 / (in_channels ** 0.5)
    w1 = jax.random.uniform(k1, (mid, in_channels), jnp.float32, -bound1, bound1)
    b1 = jax.random.uniform(k2, (mid,), jnp.float32, -bound1, bound1)
    # conv2: Conv2d(mid, C, 1) -> weight (C, mid), bias (C,)
    bound2 = 1.0 / (mid ** 0.5)
    w2 = jax.random.uniform(k3, (in_channels, mid), jnp.float32, -bound2, bound2)
    b2 = jax.random.uniform(k4, (in_channels,), jnp.float32, -bound2, bound2)

    # BatchNorm2d default init / running stats (eval mode).
    bn1 = (jnp.ones(mid), jnp.zeros(mid), jnp.zeros(mid), jnp.ones(mid))
    bn2 = (jnp.ones(in_channels), jnp.zeros(in_channels),
           jnp.zeros(in_channels), jnp.ones(in_channels))

    w1f, b1f = _fold_bn(w1, b1, *bn1)
    w2f, b2f = _fold_bn(w2, b2, *bn2)

    # Wrapper wants w1 as (C, mid) and w2 as (mid, C); biases 1-D.
    return (w1f.T, b1f, w2f.T, b2f)


def channel_attn_ref(x, w1_t, b1, w2_t, b2, is_softmax=False):
    """Pure-JAX reference of the same (eval-mode) forward."""
    pooled = jnp.mean(x.astype(jnp.float32), axis=(2, 3))  # (B, C)
    h = jnp.maximum(pooled @ w1_t + b1, 0.0)                # (B, Cmid)
    y = h @ w2_t + b2                                       # (B, C)
    att = jax.nn.softmax(y, axis=1) if is_softmax else jax.nn.sigmoid(y)
    return att[:, :, None, None].astype(x.dtype)


if __name__ == "__main__":
    key = jax.random.PRNGKey(0)
    kx, kp = jax.random.split(key)

    B, C, H, W = 2, 64, 16, 16          # in_channels=64, reduction_rate=16 -> mid=4
    x = jax.random.normal(kx, (B, C, H, W), jnp.float32)
    w1_t, b1, w2_t, b2 = init_params(kp, C, reduction_rate=16)

    out = channel_attn(x, w1_t, b1, w2_t, b2)
    out = jax.block_until_ready(out)

    ref = channel_attn_ref(x, w1_t, b1, w2_t, b2)
    assert out.shape == (B, C, 1, 1), out.shape
    assert jnp.allclose(out, ref, atol=1e-5, rtol=1e-5), \
        float(jnp.max(jnp.abs(out - ref)))

    print("KERNEL_OK")
</pallas_src>

<mosaic_0001>
module attributes {stable_mosaic.version = 11 : i64} {
  func.func @_channel_sum_kernel(%arg0: i32, %arg1: i32, %arg2: memref<1x64x256xf32, #tpu.memory_space<vmem>>, %arg3: memref<1x1x64xf32, #tpu.memory_space<vmem>>, %arg4: memref<1x64x128xf32, #tpu.memory_space<vmem>>) attributes {dimension_semantics = [#tpu.dimension_semantics<parallel>, #tpu.dimension_semantics<arbitrary>], iteration_bounds = array<i64: 2, 1>, scalar_prefetch = 0 : i64, scratch_operands = 1 : i64, tpu.core_type = #tpu.core_type<tc>, window_params = [{transform_indices = @transform_0, window_bounds = array<i64: 1, 64, 256>}, {transform_indices = @transform_1, window_bounds = array<i64: 1, 1, 64>}]} {
    %c0_i32 = arith.constant 0 : i32
    %0 = arith.cmpi eq, %arg1, %c0_i32 : i32
    %1 = arith.extui %0 : i1 to i32
    %c0_i32_0 = arith.constant 0 : i32
    %2 = arith.cmpi ne, %1, %c0_i32_0 : i32
    scf.if %2 {
      %cst_14 = arith.constant 0.000000e+00 : f32
      %20 = vector.broadcast %cst_14 : f32 to vector<1x64x128xf32>
      %c0_15 = arith.constant 0 : index
      %c0_16 = arith.constant 0 : index
      %c0_17 = arith.constant 0 : index
      %21 = vector.load %arg4[%c0_15, %c0_16, %c0_17] : memref<1x64x128xf32, #tpu.memory_space<vmem>>, vector<1x64x128xf32>
      tpu.vector_store %arg4[%c0_15, %c0_16, %c0_17], %20 {strides = array<i32>} : memref<1x64x128xf32, #tpu.memory_space<vmem>>, vector<1x64x128xf32>,
    } else {
    }
    %cst = arith.constant 0.000000e+00 : f32
    %3 = vector.broadcast %cst : f32 to vector<1x64x128xf32>
    %cst_1 = arith.constant 0.000000e+00 : f32
    %4 = vector.broadcast %cst_1 : f32 to vector<1x64x128xf32>
    %c0_i32_2 = arith.constant 0 : i32
    %5 = tpu.assume_multiple %c0_i32_2, 128 : i32
    %c0 = arith.constant 0 : index
    %c0_3 = arith.constant 0 : index
    %6 = arith.index_cast %5 : i32 to index
    %7 = vector.load %arg2[%c0, %c0_3, %6] : memref<1x64x256xf32, #tpu.memory_space<vmem>>, vector<1x64x128xf32>
    %8 = arith.addf %3, %7 : vector<1x64x128xf32>
    %c128_i32 = arith.constant 128 : i32
    %9 = tpu.assume_multiple %c128_i32, 128 : i32
    %c0_4 = arith.constant 0 : index
    %c0_5 = arith.constant 0 : index
    %10 = arith.index_cast %9 : i32 to index
    %11 = vector.load %arg2[%c0_4, %c0_5, %10] : memref<1x64x256xf32, #tpu.memory_space<vmem>>, vector<1x64x128xf32>
    %12 = arith.addf %4, %11 : vector<1x64x128xf32>
    %13 = arith.addf %8, %12 : vector<1x64x128xf32>
    %c0_6 = arith.constant 0 : index
    %c0_7 = arith.constant 0 : index
    %c0_8 = arith.constant 0 : index
    %14 = vector.load %arg4[%c0_6, %c0_7, %c0_8] : memref<1x64x128xf32, #tpu.memory_space<vmem>>, vector<1x64x128xf32>
    %15 = arith.addf %14, %13 : vector<1x64x128xf32>
    %c0_9 = arith.constant 0 : index
    %c0_10 = arith.constant 0 : index
    %c0_11 = arith.constant 0 : index
    %16 = vector.load %arg4[%c0_9, %c0_10, %c0_11] : memref<1x64x128xf32, #tpu.memory_space<vmem>>, vector<1x64x128xf32>
    tpu.vector_store %arg4[%c0_9, %c0_10, %c0_11], %15 {strides = array<i32>} : memref<1x64x128xf32, #tpu.memory_space<vmem>>, vector<1x64x128xf32>,
    %c0_i32_12 = arith.constant 0 : i32
    %17 = arith.cmpi eq, %arg1, %c0_i32_12 : i32
    %18 = arith.extui %17 : i1 to i32
    %c0_i32_13 = arith.constant 0 : i32
    %19 = arith.cmpi ne, %18, %c0_i32_13 : i32
    scf.if %19 {
      %c0_14 = arith.constant 0 : index
      %c0_15 = arith.constant 0 : index
      %c0_16 = arith.constant 0 : index
      %20 = vector.load %arg4[%c0_14, %c0_15, %c0_16] : memref<1x64x128xf32, #tpu.memory_space<vmem>>, vector<1x64x128xf32>
      %cst_17 = arith.constant dense<0.000000e+00> : vector<1x64xf32>
      %21 = vector.multi_reduction <add>, %20, %cst_17 [2] : vector<1x64x128xf32> to vector<1x64xf32>
      %22 = vector.shape_cast %21 : vector<1x64xf32> to vector<1x1x64xf32>
      %c0_18 = arith.constant 0 : index
      %c0_19 = arith.constant 0 : index
      %c0_20 = arith.constant 0 : index
      %23 = vector.load %arg3[%c0_18, %c0_19, %c0_20] : memref<1x1x64xf32, #tpu.memory_space<vmem>>, vector<1x1x64xf32>
      tpu.vector_store %arg3[%c0_18, %c0_19, %c0_20], %22 {strides = array<i32>} : memref<1x1x64xf32, #tpu.memory_space<vmem>>, vector<1x1x64xf32>,
    } else {
    }
    return
  }
  func.func @transform_0(%arg0: i32, %arg1: i32) -> (i32, i32, i32) {
    %c0_i32 = arith.constant 0 : i32
    %c0_i32_0 = arith.constant 0 : i32
    return %arg0, %c0_i32, %arg1 : i32, i32, i32
  }
  func.func @transform_1(%arg0: i32, %arg1: i32) -> (i32, i32, i32) {
    %c0_i32 = arith.constant 0 : i32
    %c0_i32_0 = arith.constant 0 : i32
    %c0_i32_1 = arith.constant 0 : i32
    return %arg0, %c0_i32, %c0_i32_0 : i32, i32, i32
  }
}

</mosaic_0001>

<llo_original>
// kernel: channel_attn.1
$region0: #{channel_attn.1}
  #allocation0 [shape = 'u32[]', space=smem, size = 0x4, offset = 0x4, fixed_abs, tag = 'smem constant byte address 0x4 - core index']
  #allocation1 [shape = 'u32[144,128]{1,0:T(1,128)}', space=vmem, size = 0x12000, scoped, tag = 'internal scratch']
  #allocation2 [shape = 'f32[1,64,128]{2,1,0:T(8,128)}', space=vmem, size = 0x8000, scoped, tag = 'scratch operand']
  %s0 = inlined_call_operand.vmem [shape: f32[2,64,256], index: 0, kind: input, shape index: {}]
  %s1 = inlined_call_operand.vmem [shape: f32[2,1,64], index: 1, kind: output, shape index: {}]
  %s2 = sld [smem:[#allocation0]]
  $region45: #{channel_attn.1} parent=0
    _
  %s4 = ssub.s32 1, %s2
  %s5 = scalar_select 0, %s4, %s2
  loop: start=0, step=1, limit=4
  $region2: #{channel_attn.1} parent=0 // loop_pre_header
    _
  $region3: #{channel_attn.1} parent=0 // loop_header
    %s7 = sphi 0, %s11
    %p8 = scmp.ge.s32.totalorder %s7, 4
    %s14 = sphi 0, %s26
    %s15 = sphi 0, %s22
    %s16 = sphi 0, %s14
    %s17 = sphi 0, %s15
    %s18 = sphi 0, %s16
    %s19 = sphi 0, %s17
    %s31 = sphi 0, %s33
    %s34 = sphi 0, %s31
    %s35 = sphi 0, %s34
    %s51 = sphi 0, %s35
    %s57 = sphi 0, %s59
    %s60 = sphi 0, %s57
    %s61 = sphi 0, %s60
    %s77 = sphi 0, %s61
  $region4: #{channel_attn.1} parent=0 // loop_header_branch
    %10 = sbr.rel (%p8) target = $region8
  $region5: #{channel_attn.1} parent=0 // loop_body
    %s12 = ssub.s32 %s7, 1
    %s13 = ssub.s32 %s7, 2
    %s20 = sadd.s32 1, %s15
    %p21 = scmp.ge.s32.totalorder %s20, 1
    %s22 = scalar_select %p21, 0, %s20
    %s23 = sadd.s32 1, %s14
    %s24 = scalar_select %p21, %s23, %s14
    %p25 = scmp.ge.s32.totalorder %s24, 2
    %s26 = scalar_select %p25, 0, %s24
    %s27 = ssub.s32 %s14, %s26
    %s28 = ssub.s32 %s15, %s22
    %s29 = sor.u32 %s27, %s28
    %p30 = scmp.eq.s32.totalorder %s29, 0
    %s32 = sadd.s32 %s31, 1
    %s33 = scalar_select %p30, %s31, %s32
    %p36 = pneg %p30
    %p37 = scmp.eq.s32.totalorder %s7, 1
    %p38 = por %p36, %p37
    %p39 = scmp.ne.s32.totalorder %s31, %s34
    %p40 = scmp.eq.s32.totalorder %s7, 0
    %p41 = por %p39, %p40
    %p42 = scmp.ne.s32.totalorder %s31, %s34
    %p43 = scmp.eq.s32.totalorder %s12, 1
    %p44 = por %p42, %p43
    %p45 = scmp.ne.s32.totalorder %s34, %s35
    %p46 = scmp.eq.s32.totalorder %s12, 0
    %p47 = por %p45, %p46
    %p48 = scmp.ne.s32.totalorder %s34, %s35
    %p49 = scmp.eq.s32.totalorder %s13, 1
    %p50 = por %p48, %p49
    %p52 = scmp.ne.s32.totalorder %s35, %s51
    %p53 = scmp.eq.s32.totalorder %s13, 0
    %p54 = por %p52, %p53
    %s55 = ssub.s32 %s14, %s26
    %p56 = scmp.eq.s32.totalorder %s55, 0
    %s58 = sadd.s32 %s57, 1
    %s59 = scalar_select %p56, %s57, %s58
    %p62 = pneg %p56
    %p63 = scmp.eq.s32.totalorder %s7, 1
    %p64 = por %p62, %p63
    %p65 = scmp.ne.s32.totalorder %s57, %s60
    %p66 = scmp.eq.s32.totalorder %s7, 0
    %p67 = por %p65, %p66
    %p68 = scmp.ne.s32.totalorder %s57, %s60
    %p69 = scmp.eq.s32.totalorder %s12, 1
    %p70 = por %p68, %p69
    %p71 = scmp.ne.s32.totalorder %s60, %s61
    %p72 = scmp.eq.s32.totalorder %s12, 0
    %p73 = por %p71, %p72
    %p74 = scmp.ne.s32.totalorder %s60, %s61
    %p75 = scmp.eq.s32.totalorder %s13, 1
    %p76 = por %p74, %p75
    %p78 = scmp.ne.s32.totalorder %s61, %s77
    %p79 = scmp.eq.s32.totalorder %s13, 0
    %p80 = por %p78, %p79
    %p81 = scmp.le.s32.totalorder 1, %s7
    %p82 = scmp.lt.s32.totalorder %s7, 3
    %p83 = pnand %p81, %p82
    %p84 = pneg %p83
    // Predicated region
    $region9: #{channel_attn.1} parent=5 // pred_check
      _
    $region10: #{channel_attn.1} parent=5 // pred_check_branch
      %86 = sbr.rel (%p83) target = $region12
    $region11: #{channel_attn.1} parent=5 // pred_region
      %s87 = ssub.s32 %s7, 1
    $region12: #{channel_attn.1} parent=5 // pred_fallthru
      _
    %p88 = scmp.lt.s32.totalorder %s7, 2
    // Predicated region
    $region13: #{channel_attn.1} parent=5 // pred_check
      %p89 = pneg %p88
    $region14: #{channel_attn.1} parent=5 // pred_check_branch
      %91 = sbr.rel (%p89) target = $region16
    $region15: #{channel_attn.1} parent=5 // pred_region
      // Predicated region
      $region17: #{channel_attn.1} parent=15 // pred_check
        %p92 = pneg %p41
      $region18: #{channel_attn.1} parent=15 // pred_check_branch
        %94 = sbr.rel (%p92) target = $region20
      $region19: #{channel_attn.1} parent=15 // pred_region
        %s95 = smul.u32 2, %s15
        %p96 = scmp.lt.s32.totalorder %s14, 1
        %s97 = scalar_select %p96, %s14, 1
        %p98 = scmp.lt.s32.totalorder %s95, 1
        %s99 = scalar_select %p98, %s95, 1
        %s100 = smul.addr %s97, 16
        %s101 = sadd.s32 %s99, %s100
        %s102 = smul.addr %s101, 8
        %s103 = scalar_lea.vmem %s0, %s102
        %s104 = smul.u32 2, %s15
      $region20: #{channel_attn.1} parent=15 // pred_fallthru
        _
    $region16: #{channel_attn.1} parent=5 // pred_fallthru
      _
    %p105 = scmp.le.s32.totalorder 1, %s7
    %p106 = scmp.lt.s32.totalorder %s7, 3
    %p107 = pnand %p105, %p106
    %p108 = pneg %p107
    // Predicated region
    $region21: #{channel_attn.1} parent=5 // pred_check
      _
    $region22: #{channel_attn.1} parent=5 // pred_check_branch
      %110 = sbr.rel (%p107) target = $region24
    $region23: #{channel_attn.1} parent=5 // pred_region
      %s111 = ssub.s32 %s7, 1
      %s112 = smul.u32 2, %s17
      %p113 = scmp.lt.s32.totalorder %s16, 1
      %s114 = scalar_select %p113, %s16, 1
      %p115 = scmp.lt.s32.totalorder %s112, 1
      %s116 = scalar_select %p115, %s112, 1
      %s117 = smul.addr %s114, 16
      %s118 = sadd.s32 %s116, %s117
      %s119 = smul.addr %s118, 8
      %s120 = scalar_lea.vmem %s0, %s119
      %p121 = pneg %p47
      %p122 = pneg %p44
      %p123 = pneg %p73
      %p124 = pneg %p70
      %p125 = scmp.lt.s32.totalorder %s16, 1
      %s126 = scalar_select %p125, %s16, 1
      %s127 = scalar_lea.vmem %s1, %s126
      %s128 = smul.u32 2, %s17
      %p129 = scmp.lt.s32.totalorder %s16, 1
      %s130 = scalar_select %p129, %s16, 1
      %p131 = scmp.lt.s32.totalorder %s128, 1
      %s132 = scalar_select %p131, %s128, 1
      %s133 = smul.addr %s130, 16
      %s134 = sadd.s32 %s132, %s133
      %s135 = smul.addr %s134, 8
      %s136 = scalar_lea.vmem %s0, %s135
      %s137 = smul.u32 2, %s17
      %p138 = scmp.lt.s32.totalorder %s16, 1
      %s139 = scalar_select %p138, %s16, 1
      %s140 = scalar_lea.vmem %s1, %s139
      %p141 = scmp.eq.s32.totalorder %s17, 0
      // Predicated region
      $region25: #{channel_attn.1} parent=23 // pred_check
        %p142 = pneg %p141
      $region26: #{channel_attn.1} parent=23 // pred_check_branch
        %144 = sbr.rel (%p142) target = $region28
      $region27: #{channel_attn.1} parent=23 // pred_region
        %145 = vst [vmem:[#allocation2] sm:$0xff] 0.0
        %146 = vst [vmem:[#allocation2 + $0x8] sm:$0xff] 0.0
        %147 = vst [vmem:[#allocation2 + $0x10] sm:$0xff] 0.0
        %148 = vst [vmem:[#allocation2 + $0x18] sm:$0xff] 0.0
        %149 = vst [vmem:[#allocation2 + $0x20] sm:$0xff] 0.0
        %150 = vst [vmem:[#allocation2 + $0x28] sm:$0xff] 0.0
        %151 = vst [vmem:[#allocation2 + $0x30] sm:$0xff] 0.0
        %152 = vst [vmem:[#allocation2 + $0x38] sm:$0xff] 0.0
      $region28: #{channel_attn.1} parent=23 // pred_fallthru
        _
      %v153 = vld [vmem:[%s136] sm:$0xff]
      %v154 = vld [vmem:[%s136 + $0x10] sm:$0xff]
      %v155 = vld [vmem:[%s136 + $0x20] sm:$0xff]
      %v156 = vld [vmem:[%s136 + $0x30] sm:$0xff]
      %v157 = vld [vmem:[%s136 + $0x40] sm:$0xff]
      %v158 = vld [vmem:[%s136 + $0x50] sm:$0xff]
      %v159 = vld [vmem:[%s136 + $0x60] sm:$0xff]
      %v160 = vld [vmem:[%s136 + $0x70] sm:$0xff]
      %v161 = vadd.f32 %v153, 0.0
      %v162 = vadd.f32 %v154, 0.0
      %v163 = vadd.f32 %v155, 0.0
      %v164 = vadd.f32 %v156, 0.0
      %v165 = vadd.f32 %v157, 0.0
      %v166 = vadd.f32 %v158, 0.0
      %v167 = vadd.f32 %v159, 0.0
      %v168 = vadd.f32 %v160, 0.0
      %s169 = scalar_lea.vmem %s136, 8
      %v170 = vld [vmem:[%s169] sm:$0xff]
      %v171 = vld [vmem:[%s169 + $0x10] sm:$0xff]
      %v172 = vld [vmem:[%s169 + $0x20] sm:$0xff]
      %v173 = vld [vmem:[%s169 + $0x30] sm:$0xff]
      %v174 = vld [vmem:[%s169 + $0x40] sm:$0xff]
      %v175 = vld [vmem:[%s169 + $0x50] sm:$0xff]
      %v176 = vld [vmem:[%s169 + $0x60] sm:$0xff]
      %v177 = vld [vmem:[%s169 + $0x70] sm:$0xff]
      %v178 = vadd.f32 %v170, 0.0
      %v179 = vadd.f32 %v171, 0.0
      %v180 = vadd.f32 %v172, 0.0
      %v181 = vadd.f32 %v173, 0.0
      %v182 = vadd.f32 %v174, 0.0
      %v183 = vadd.f32 %v175, 0.0
      %v184 = vadd.f32 %v176, 0.0
      %v185 = vadd.f32 %v177, 0.0
      %v186 = vadd.f32 %v161, %v178
      %v187 = vadd.f32 %v162, %v179
      %v188 = vadd.f32 %v163, %v180
      %v189 = vadd.f32 %v164, %v181
      %v190 = vadd.f32 %v165, %v182
      %v191 = vadd.f32 %v166, %v183
      %v192 = vadd.f32 %v167, %v184
      %v193 = vadd.f32 %v168, %v185
      %v194 = vld [vmem:[#allocation2] sm:$0xff]
      %v195 = vld [vmem:[#allocation2 + $0x8] sm:$0xff]
      %v196 = vld [vmem:[#allocation2 + $0x10] sm:$0xff]
      %v197 = vld [vmem:[#allocation2 + $0x18] sm:$0xff]
      %v198 = vld [vmem:[#allocation2 + $0x20] sm:$0xff]
      %v199 = vld [vmem:[#allocation2 + $0x28] sm:$0xff]
      %v200 = vld [vmem:[#allocation2 + $0x30] sm:$0xff]
      %v201 = vld [vmem:[#allocation2 + $0x38] sm:$0xff]
      %v202 = vadd.f32 %v194, %v186
      %v203 = vadd.f32 %v195, %v187
      %v204 = vadd.f32 %v196, %v188
      %v205 = vadd.f32 %v197, %v189
      %v206 = vadd.f32 %v198, %v190
      %v207 = vadd.f32 %v199, %v191
      %v208 = vadd.f32 %v200, %v192
      %v209 = vadd.f32 %v201, %v193
      %210 = vst [vmem:[#allocation2] sm:$0xff] %v202
      %211 = vst [vmem:[#allocation2 + $0x8] sm:$0xff] %v203
      %212 = vst [vmem:[#allocation2 + $0x10] sm:$0xff] %v204
      %213 = vst [vmem:[#allocation2 + $0x18] sm:$0xff] %v205
      %214 = vst [vmem:[#allocation2 + $0x20] sm:$0xff] %v206
      %215 = vst [vmem:[#allocation2 + $0x28] sm:$0xff] %v207
      %216 = vst [vmem:[#allocation2 + $0x30] sm:$0xff] %v208
      %217 = vst [vmem:[#allocation2 + $0x38] sm:$0xff] %v209
      // Predicated region
      $region29: #{channel_attn.1} parent=23 // pred_check
        %p218 = pneg %p141
      $region30: #{channel_attn.1} parent=23 // pred_check_branch
        %220 = sbr.rel (%p218) target = $region32
      $region31: #{channel_attn.1} parent=23 // pred_region
        %v221 = vld [vmem:[#allocation2] sm:$0xff]
        %v222 = vld [vmem:[#allocation2 + $0x8] sm:$0xff]
        %v223 = vld [vmem:[#allocation2 + $0x10] sm:$0xff]
        %v224 = vld [vmem:[#allocation2 + $0x18] sm:$0xff]
        %v225 = vld [vmem:[#allocation2 + $0x20] sm:$0xff]
        %v226 = vld [vmem:[#allocation2 + $0x28] sm:$0xff]
        %v227 = vld [vmem:[#allocation2 + $0x30] sm:$0xff]
        %v228 = vld [vmem:[#allocation2 + $0x38] sm:$0xff]
        %229 = vadd.xlane.f32.xlu0 %v221
        %v230 = vpop.xlane.xlu0 %229
        %231 = vadd.xlane.f32.xlu0 %v222
        %v232 = vpop.xlane.xlu0 %231
        %233 = vadd.xlane.f32.xlu0 %v223
        %v234 = vpop.xlane.xlu0 %233
        %235 = vadd.xlane.f32.xlu0 %v224
        %v236 = vpop.xlane.xlu0 %235
        %237 = vadd.xlane.f32.xlu0 %v225
        %v238 = vpop.xlane.xlu0 %237
        %239 = vadd.xlane.f32.xlu0 %v226
        %v240 = vpop.xlane.xlu0 %239
        %241 = vadd.xlane.f32.xlu0 %v227
        %v242 = vpop.xlane.xlu0 %241
        %243 = vadd.xlane.f32.xlu0 %v228
        %v244 = vpop.xlane.xlu0 %243
        %v253 = vlaneseq
        %v254 = vand.u32 %v253, 127
        %v255 = vlaneseq
        %v256 = vshrl.u32 %v255, 7
        %v257 = vsub.s32 %v254, %v256
        %v258 = vrot.slane %v230, %v257
        %v259 = vadd.s32 %v254, 4294967288
        %v260 = vlaneseq
        %v261 = vshrl.u32 %v260, 7
        %v262 = vsub.s32 %v259, %v261
        %v263 = vrot.slane %v232, %v262
        %vm264 = vcmask 130112
        %v265 = vsel %vm264, %v263, %v258
        %v266 = vadd.s32 %v254, 4294967280
        %v267 = vlaneseq
        %v268 = vshrl.u32 %v267, 7
        %v269 = vsub.s32 %v266, %v268
        %v270 = vrot.slane %v234, %v269
        %vm271 = vcmask 195712
        %v272 = vsel %vm271, %v270, %v265
        %v273 = vadd.s32 %v254, 4294967272
        %v274 = vlaneseq
        %v275 = vshrl.u32 %v274, 7
        %v276 = vsub.s32 %v273, %v275
        %v277 = vrot.slane %v236, %v276
        %vm278 = vcmask 261312
        %v279 = vsel %vm278, %v277, %v272
        %v280 = vadd.s32 %v254, 4294967264
        %v281 = vlaneseq
        %v282 = vshrl.u32 %v281, 7
        %v283 = vsub.s32 %v280, %v282
        %v284 = vrot.slane %v238, %v283
        %vm285 = vcmask 326912
        %v286 = vsel %vm285, %v284, %v279
        %v287 = vadd.s32 %v254, 4294967256
        %v288 = vlaneseq
        %v289 = vshrl.u32 %v288, 7
        %v290 = vsub.s32 %v287, %v289
        %v291 = vrot.slane %v240, %v290
        %vm292 = vcmask 392512
        %v293 = vsel %vm292, %v291, %v286
        %v294 = vadd.s32 %v254, 4294967248
        %v295 = vlaneseq
        %v296 = vshrl.u32 %v295, 7
        %v297 = vsub.s32 %v294, %v296
        %v298 = vrot.slane %v242, %v297
        %vm299 = vcmask 458112
        %v300 = vsel %vm299, %v298, %v293
        %v301 = vadd.s32 %v254, 4294967240
        %v302 = vlaneseq
        %v303 = vshrl.u32 %v302, 7
        %v304 = vsub.s32 %v301, %v303
        %v305 = vrot.slane %v244, %v304
        %vm306 = vcmask 523712
        %v307 = vsel %vm306, %v305, %v300
        %vm309 = vcmask 516096
        %310 = vst.msk [vmem:[%s140] sm:$0x1] %vm309, %v307
      $region32: #{channel_attn.1} parent=23 // pred_fallthru
        _
      %p311 = scmp.lt.s32.totalorder %s16, 1
      %s312 = scalar_select %p311, %s16, 1
      %s313 = scalar_lea.vmem %s1, %s312
      // Predicated region
      $region33: #{channel_attn.1} parent=23 // pred_check
        %p314 = pneg %p70
      $region34: #{channel_attn.1} parent=23 // pred_check_branch
        %316 = sbr.rel (%p314) target = $region36
      $region35: #{channel_attn.1} parent=23 // pred_region
        _
      $region36: #{channel_attn.1} parent=23 // pred_fallthru
        _
    $region24: #{channel_attn.1} parent=5 // pred_fallthru
      _
    %p317 = scmp.le.s32.totalorder 2, %s7
    // Predicated region
    $region37: #{channel_attn.1} parent=5 // pred_check
      %p318 = pneg %p317
    $region38: #{channel_attn.1} parent=5 // pred_check_branch
      %320 = sbr.rel (%p318) target = $region40
    $region39: #{channel_attn.1} parent=5 // pred_region
      %s321 = ssub.s32 %s7, 2
      // Predicated region
      $region41: #{channel_attn.1} parent=39 // pred_check
        %p322 = pneg %p76
      $region42: #{channel_attn.1} parent=39 // pred_check_branch
        %324 = sbr.rel (%p322) target = $region44
      $region43: #{channel_attn.1} parent=39 // pred_region
        %p325 = scmp.lt.s32.totalorder %s18, 1
        %s326 = scalar_select %p325, %s18, 1
        %s327 = scalar_lea.vmem %s1, %s326
      $region44: #{channel_attn.1} parent=39 // pred_fallthru
        _
    $region40: #{channel_attn.1} parent=5 // pred_fallthru
      _
  $region6: #{channel_attn.1} parent=0 // loop_footer
    %s11 = sadd.s32 1, %s7
  $region7: #{channel_attn.1} parent=0 // loop_footer_branch
    %6 = sbr.rel target = $region3
  $region8: #{channel_attn.1} parent=0 // loop_exit
    _

</llo_original>
